<compile_context>
chip_gen: v7x
topology: tpu7x:2x2x1
jax: 0.10.0
libtpu: 0.0.40
codegen_flags: <defaults>
</compile_context>

<pallas_src>
import functools

import jax
import jax.numpy as jnp
from jax.experimental import pallas as pl
from jax.experimental.pallas import tpu as pltpu

_LANE = 128


def _sublane_multiple(dtype) -> int:
    """Minimum second-to-last tile multiple for the packed dtype."""
    itemsize = jnp.dtype(dtype).itemsize
    return {4: 8, 2: 16, 1: 32}.get(itemsize, 8)


def _lambda_kernel(x_ref, o_ref, *, func, compute_dtype):
    x = x_ref[...]
    if compute_dtype is not None:
        x = x.astype(compute_dtype)
    o_ref[...] = func(x).astype(o_ref.dtype)


def lambda_forward(func, x, *, block_bytes=2 * 1024 * 1024,
                   min_pallas_bytes=256 * 1024,
                   transcendentals_per_elem=0):
    """Pallas equivalent of Lambda(func).forward(x) for elementwise `func`.

    Note: padded / out-of-bounds elements of the partial last block are fed
    through `func` (their writes are masked); this is safe for any total
    elementwise function such as square / clamped log.
    """
    x = jnp.asarray(x)
    orig_shape = x.shape
    orig_dtype = x.dtype
    n = x.size
    itemsize = jnp.dtype(orig_dtype).itemsize

    # Degenerate / tiny inputs: plain XLA (launch + layout plumbing would
    # dwarf the <1 us of actual work, and XLA fuses it into neighboring ops).
    if n == 0 or n * itemsize < min_pallas_bytes:
        return func(x)

    # Keep in-kernel math in f32 for sub-32-bit floats; cast only on store.
    compute_dtype = None
    if jnp.issubdtype(orig_dtype, jnp.floating) and itemsize < 4:
        compute_dtype = jnp.float32

    sub = _sublane_multiple(orig_dtype)

    flat = jnp.reshape(x, (-1,))                 # bitcast, no HBM copy
    rows = pl.cdiv(n, _LANE)
    pad = rows * _LANE - n
    if pad:
        # Only materialize a pad copy when the flat size isn't lane-aligned.
        flat = jnp.pad(flat, (0, pad))
    slab = jnp.reshape(flat, (rows, _LANE))

    # ~block_bytes per block, rounded to the dtype's sublane multiple and
    # clamped to the (sublane-rounded) number of rows.  grid uses cdiv so a
    # ragged last block is handled by Pallas masking — no row-padding copy.
    max_tile = max(sub, (block_bytes // (_LANE * itemsize)) // sub * sub)
    rows_rounded = ((rows + sub - 1) // sub) * sub
    row_tile = min(max_tile, rows_rounded)
    grid = (pl.cdiv(rows, row_tile),)

    cost = pl.CostEstimate(
        flops=n,
        transcendentals=transcendentals_per_elem * n,
        bytes_accessed=2 * n * itemsize,
    )

    kernel = functools.partial(_lambda_kernel, func=func,
                               compute_dtype=compute_dtype)
    out = pl.pallas_call(
        kernel,
        out_shape=jax.ShapeDtypeStruct((rows, _LANE), orig_dtype),
        grid_spec=pltpu.PrefetchScalarGridSpec(
            num_scalar_prefetch=0,
            grid=grid,
            in_specs=[pl.BlockSpec((row_tile, _LANE), lambda i: (i, 0))],
            out_specs=pl.BlockSpec((row_tile, _LANE), lambda i: (i, 0)),
        ),
        compiler_params=pltpu.CompilerParams(
            dimension_semantics=("parallel",),
        ),
        cost_estimate=cost,
    )(slab)

    out_flat = jnp.reshape(out, (-1,))
    if pad:
        out_flat = out_flat[:n]
    return jnp.reshape(out_flat, orig_shape)


# The funcs ShallowConvNet actually passes to Lambda:
def square_fn(x):
    return x * x


def safe_log_fn(x):
    return jnp.log(jnp.clip(x, 1e-6, None))


def square_log_fn(x):
    # Fused ShallowConvNet activation pair: one kernel, one HBM round trip.
    return safe_log_fn(square_fn(x))


if __name__ == "__main__":
    key = jax.random.PRNGKey(0)
    k1, k2, k3 = jax.random.split(key, 3)

    # Small NCHW input consistent with a ShallowConvNet feature map.
    x = jax.random.normal(k1, (2, 4, 16, 16), dtype=jnp.float32)

    # Force the Pallas path even for these small test shapes.
    run = functools.partial(lambda_forward, min_pallas_bytes=0)

    # Lambda(square)
    y_sq = jax.block_until_ready(run(square_fn, x))
    ref_sq = x * x
    assert y_sq.shape == x.shape and y_sq.dtype == x.dtype
    assert jnp.allclose(y_sq, ref_sq, atol=1e-6, rtol=1e-6)

    # Lambda(log(clamp(., 1e-6)))  -- fed the squared output like ShallowConvNet
    y_log = jax.block_until_ready(run(safe_log_fn, y_sq,
                                      transcendentals_per_elem=1))
    ref_log = jnp.log(jnp.clip(ref_sq, 1e-6, None))
    assert jnp.allclose(y_log, ref_log, atol=1e-5, rtol=1e-5)

    # Fused square->log: single kernel invocation, halves HBM traffic.
    y_fused = jax.block_until_ready(run(square_log_fn, x,
                                        transcendentals_per_elem=1))
    assert jnp.allclose(y_fused, ref_log, atol=1e-5, rtol=1e-5)

    # Ragged size (not a multiple of 128) exercises the partial-block path.
    xr = jax.random.normal(k2, (2, 3, 13, 9), dtype=jnp.float32)
    y_r = jax.block_until_ready(run(square_fn, xr))
    assert y_r.shape == xr.shape
    assert jnp.allclose(y_r, xr * xr, atol=1e-6, rtol=1e-6)

    # bf16 input exercises dtype-aware sublane rounding + f32 in-kernel math.
    xb = jax.random.normal(k3, (2, 4, 16, 16), dtype=jnp.bfloat16)
    y_b = jax.block_until_ready(run(square_fn, xb))
    ref_b = (xb.astype(jnp.float32) ** 2).astype(jnp.bfloat16)
    assert y_b.dtype == jnp.bfloat16
    assert jnp.allclose(y_b.astype(jnp.float32), ref_b.astype(jnp.float32),
                        atol=1e-2, rtol=1e-2)

    print("KERNEL_OK")
</pallas_src>

<mosaic_0001>
module attributes {stable_mosaic.version = 11 : i64} {
  func.func @_lambda_kernel(%arg0: i32, %arg1: memref<16x128xf32, #tpu.memory_space<vmem>>, %arg2: memref<16x128xf32, #tpu.memory_space<vmem>>) attributes {dimension_semantics = [#tpu.dimension_semantics<parallel>], iteration_bounds = array<i64: 1>, scalar_prefetch = 0 : i64, scratch_operands = 0 : i64, tpu.core_type = #tpu.core_type<tc>, window_params = [{transform_indices = @transform_0, window_bounds = array<i64: 16, 128>}, {transform_indices = @transform_1, window_bounds = array<i64: 16, 128>}]} {
    %c0 = arith.constant 0 : index
    %c0_0 = arith.constant 0 : index
    %0 = vector.load %arg1[%c0, %c0_0] : memref<16x128xf32, #tpu.memory_space<vmem>>, vector<16x128xf32>
    %1 = arith.mulf %0, %0 : vector<16x128xf32>
    %c0_1 = arith.constant 0 : index
    %c0_2 = arith.constant 0 : index
    %2 = vector.load %arg2[%c0_1, %c0_2] : memref<16x128xf32, #tpu.memory_space<vmem>>, vector<16x128xf32>
    tpu.vector_store %arg2[%c0_1, %c0_2], %1 {strides = array<i32>} : memref<16x128xf32, #tpu.memory_space<vmem>>, vector<16x128xf32>,
    return
  }
  func.func @transform_0(%arg0: i32) -> (i32, i32) {
    %c0_i32 = arith.constant 0 : i32
    %c0_i32_0 = arith.constant 0 : i32
    return %arg0, %c0_i32 : i32, i32
  }
  func.func @transform_1(%arg0: i32) -> (i32, i32) {
    %c0_i32 = arith.constant 0 : i32
    %c0_i32_0 = arith.constant 0 : i32
    return %arg0, %c0_i32 : i32, i32
  }
}

</mosaic_0001>

<llo_original>
// kernel: tpu_custom_call.1
$region0: #{tpu_custom_call.1}
  #allocation0 [shape = 'u32[]', space=smem, size = 0x4, offset = 0x4, fixed_abs, tag = 'smem constant byte address 0x4 - core index']
  #allocation1 [shape = 'u32[144,128]{1,0:T(1,128)}', space=vmem, size = 0x12000, scoped, tag = 'internal scratch']
  %s0 = inlined_call_operand.hbm [shape: f32[16,128], index: 0, kind: input, shape index: {}]
  %s1 = inlined_call_operand.hbm [shape: f32[16,128], index: 1, kind: output, shape index: {}]
  %s2 = sld [smem:[#allocation0]]
  $region18: #{tpu_custom_call.1} parent=0
    _
  %s4 = ssub.s32 1, %s2
  %s5 = scalar_select 0, %s4, %s2
  $region1: #{tpu_custom_call.1} parent=0
    #allocation2 [shape = 'u8[8192]{0}', space=vmem, size = 0x2000, scoped, tag = 'input window, operand 0, single buffered']
    #allocation3 [shape = 's32[1]{0}', space=sflag, size = 0x4, scoped, tag = 'scoped memory for tpu_custom_call.1']
    #allocation4 [shape = 's32[1]{0}', space=sflag, size = 0x4, scoped, tag = 'scoped memory for tpu_custom_call.1']
    #allocation5 [shape = 'u8[8192]{0}', space=vmem, size = 0x2000, scoped, tag = 'output window, operand 0, single buffered']
    %6 = vsyncpa [#allocation3], 0
    %7 = vsyncpa [#allocation4], 0
    // Predicated region
    $region2: #{tpu_custom_call.1} parent=1 // pred_check
      _
    $region3: #{tpu_custom_call.1} parent=1 // pred_check_branch
      %9 = sbr.rel (0) target = $region5
    $region4: #{tpu_custom_call.1} parent=1 // pred_region
      %s11 = ssub.s32 256, 256
      %12 = vsyncadd [#allocation3], %s11
      %s13 = sshll.u32 [#allocation2], 4
      %s14 = int_to_ptr.vmem [resolvable:$true] %s13
      %19 = dma.hbm_to_vmem [thread:$0]  %s0, 256, %s14, [#allocation3], 128, 128, 8
    $region5: #{tpu_custom_call.1} parent=1 // pred_fallthru
      _
    // Predicated region
    $region6: #{tpu_custom_call.1} parent=1 // pred_check
      _
    $region7: #{tpu_custom_call.1} parent=1 // pred_check_branch
      %21 = sbr.rel (0) target = $region9
    $region8: #{tpu_custom_call.1} parent=1 // pred_region
      %22 = dma.done [#allocation3], 256
    $region9: #{tpu_custom_call.1} parent=1 // pred_fallthru
      _
    %v23 = vld [vmem:[#allocation2] sm:$0xff]
    %v24 = vld [vmem:[#allocation2 + $0x8] sm:$0xff]
    %v25 = vmul.f32 %v23, %v23
    %v26 = vmul.f32 %v24, %v24
    %27 = vst [vmem:[#allocation5] sm:$0xff] %v25
    %28 = vst [vmem:[#allocation5 + $0x8] sm:$0xff] %v26
    // Predicated region
    $region10: #{tpu_custom_call.1} parent=1 // pred_check
      _
    $region11: #{tpu_custom_call.1} parent=1 // pred_check_branch
      %30 = sbr.rel (0) target = $region13
    $region12: #{tpu_custom_call.1} parent=1 // pred_region
      %s32 = ssub.s32 256, 256
      %33 = vsyncadd [#allocation4], %s32
      %s34 = sshll.u32 [#allocation5], 4
      %s35 = int_to_ptr.vmem [resolvable:$true] %s34
      %40 = dma.vmem_to_hbm [thread:$0]  %s35, 256, %s1, [#allocation4], 128, 128, 8
    $region13: #{tpu_custom_call.1} parent=1 // pred_fallthru
      _
    // Predicated region
    $region14: #{tpu_custom_call.1} parent=1 // pred_check
      _
    $region15: #{tpu_custom_call.1} parent=1 // pred_check_branch
      %42 = sbr.rel (0) target = $region17
    $region16: #{tpu_custom_call.1} parent=1 // pred_region
      %43 = dma.done [#allocation4], 256
    $region17: #{tpu_custom_call.1} parent=1 // pred_fallthru
      _
    %44 = vsyncpa [#allocation3], 1
    %45 = vsyncpa [#allocation4], 1

</llo_original>
